<compile_context>
chip_gen: v7x
topology: tpu7x:2x2x1
jax: 0.10.0
libtpu: 0.0.40
codegen_flags: <defaults>
</compile_context>

<pallas_src>
from functools import partial

import jax
import jax.numpy as jnp
from jax.experimental import pallas as pl
from jax.experimental.pallas import tpu as pltpu


def _round_up(x, m):
    return (x + m - 1) // m * m


# --------------------------------------------------------------------------
# Kernel
# --------------------------------------------------------------------------

def _make_kernel(l_pad, h_pad, out_w):
    """Fused actor+critic MLP: 3 MXU matmuls on a packed block-diagonal weight slab.

    Weight slab (bf16, rows = l_pad + 2*h_pad):
        rows [0, l_pad)              : W1 = [aw1 | cw1]                (l_pad, h_pad)
        rows [l_pad, l_pad+h_pad)    : W2 = blockdiag(aw2, cw2)        (h_pad, h_pad)
        rows [l_pad+h_pad, +h_pad)   : W3 = blockdiag(aw3, cw3)        (h_pad, h_pad)
    Bias slab (f32, (8, h_pad)): rows 0,1,2 = b1, b2, b3.
    """
    rw1 = l_pad
    rw2 = rw1 + h_pad
    rw3 = rw2 + h_pad

    def kernel(x_ref, w_ref, b_ref, out_ref):
        # bf16 MXU operands; f32 accumulation / bias-add / ReLU.
        x = x_ref[...].astype(jnp.bfloat16)                  # (Bt, l_pad)

        w1 = w_ref[0:rw1, :]                                 # (l_pad, h_pad) bf16
        w2 = w_ref[rw1:rw2, :]                               # (h_pad, h_pad) bf16
        w3 = w_ref[rw2:rw3, :out_w]                          # (h_pad, out_w) bf16
        b1 = b_ref[0:1, :]                                   # (1, h_pad) f32
        b2 = b_ref[1:2, :]
        b3 = b_ref[2:3, :out_w]

        # Fused actor|critic: padded columns/rows are exactly zero, stay zero
        # through bias-add and ReLU, and contribute nothing.
        h = jnp.dot(x, w1, preferred_element_type=jnp.float32) + b1
        h = jnp.maximum(h, 0.0)
        h = jnp.dot(h.astype(jnp.bfloat16), w2,
                    preferred_element_type=jnp.float32) + b2
        h = jnp.maximum(h, 0.0)
        o = jnp.dot(h.astype(jnp.bfloat16), w3,
                    preferred_element_type=jnp.float32) + b3

        out_ref[...] = o.astype(out_ref.dtype)               # lane-dense unmasked store

    return kernel


# --------------------------------------------------------------------------
# Host-side packing (done once, not per forward call)
# --------------------------------------------------------------------------

def pack_params(params, l_obs, n_act, hidden_size):
    """Pack the 12 per-layer tensors into one bf16 weight slab + one f32 bias slab.

    NOTE: correctness of the fused/padded layout relies on (a) padded weight
    rows/cols and padded bias lanes being exactly zero, and (b) the activation
    satisfying act(0) == 0 (ReLU). Do not introduce non-zero padding or a
    non-zero-at-zero activation without revisiting this.
    """
    H = hidden_size
    l_pad = _round_up(max(l_obs, 8), 8)
    h_pad = _round_up(max(2 * H, n_act + 1), 128)

    # Layer 1: [aw1 | cw1] side by side.
    w1 = jnp.zeros((l_pad, h_pad), jnp.float32)
    w1 = w1.at[:l_obs, :H].set(params["aw1"]).at[:l_obs, H:2 * H].set(params["cw1"])

    # Layer 2: blockdiag(aw2, cw2).
    w2 = jnp.zeros((h_pad, h_pad), jnp.float32)
    w2 = w2.at[:H, :H].set(params["aw2"]).at[H:2 * H, H:2 * H].set(params["cw2"])

    # Layer 3: blockdiag(aw3, cw3) -> output cols [0:n_act]=pi, [n_act]=vi.
    w3 = jnp.zeros((h_pad, h_pad), jnp.float32)
    w3 = w3.at[:H, :n_act].set(params["aw3"]).at[H:2 * H, n_act:n_act + 1].set(params["cw3"])

    w_slab = jnp.concatenate([w1, w2, w3], axis=0).astype(jnp.bfloat16)

    # Biases stay f32 (tiny, separate operand) so the bias-add is full precision.
    bias = jnp.zeros((8, h_pad), jnp.float32)
    bias = bias.at[0, :H].set(params["ab1"][0]).at[0, H:2 * H].set(params["cb1"][0])
    bias = bias.at[1, :H].set(params["ab2"][0]).at[1, H:2 * H].set(params["cb2"][0])
    bias = bias.at[2, :n_act].set(params["ab3"][0]).at[2, n_act:n_act + 1].set(params["cb3"][0])

    return dict(w_slab=w_slab, bias=bias, l_obs=l_obs, n_act=n_act, hidden=H,
                l_pad=l_pad, h_pad=h_pad)


# --------------------------------------------------------------------------
# Forward wrapper
# --------------------------------------------------------------------------

@partial(jax.jit, static_argnums=(3, 4, 5, 6, 7))
def _forward(x, w_slab, bias, l_obs, n_act, l_pad, h_pad, b_tile):
    B = x.shape[0]
    out_w = _round_up(n_act + 1, 128)        # decoupled from h_pad; lane-dense
    rows = l_pad + 2 * h_pad

    # Batch tile: multiple of 8, capped at b_tile; guarantee >=2 grid steps for
    # B > 8 so v7x's two TensorCores both get work via dimension_semantics.
    bt = max(8, min(int(b_tile), _round_up(max((B + 1) // 2, 8), 8)))
    b_pad = _round_up(B, bt)

    # Pad only when needed; inside this jit so XLA fuses it (no standalone copy).
    if b_pad != B or l_pad != l_obs:
        x_in = jnp.pad(x, ((0, b_pad - B), (0, l_pad - l_obs)))
    else:
        x_in = x

    flops = 2 * b_pad * h_pad * (l_pad + h_pad + out_w)
    bytes_accessed = (b_pad * l_pad * x.dtype.itemsize          # x read
                      + rows * h_pad * 2 + 8 * h_pad * 4        # weights + biases
                      + b_pad * out_w * 2)                      # bf16 output write

    out = pl.pallas_call(
        _make_kernel(l_pad, h_pad, out_w),
        out_shape=jax.ShapeDtypeStruct((b_pad, out_w), jnp.bfloat16),
        grid=(b_pad // bt,),
        in_specs=[
            # x tiles stream (double-buffered) over the batch grid.
            pl.BlockSpec((bt, l_pad), lambda i: (i, 0)),
            # Weight slab: constant index_map -> DMA'd once, stays VMEM-resident.
            pl.BlockSpec((rows, h_pad), lambda i: (0, 0)),
            # Bias slab: constant index_map, tiny, VMEM-resident.
            pl.BlockSpec((8, h_pad), lambda i: (0, 0)),
        ],
        out_specs=pl.BlockSpec((bt, out_w), lambda i: (i, 0)),
        compiler_params=pltpu.CompilerParams(
            dimension_semantics=("parallel",),      # megacore batch sharding on v7x
            vmem_limit_bytes=32 << 20,              # headroom for large batch tiles
        ),
        cost_estimate=pl.CostEstimate(
            flops=flops, transcendentals=0, bytes_accessed=bytes_accessed),
    )(x_in, w_slab, bias)

    pi = out[:B, :n_act].astype(jnp.float32)
    vi = out[:B, n_act:n_act + 1].astype(jnp.float32)
    return pi, vi


def actor_critic_forward(x, packed, *, b_tile=2048):
    """x: [B, l_obs] float32. packed: output of pack_params. Returns (pi, vi)."""
    return _forward(x, packed["w_slab"], packed["bias"],
                    packed["l_obs"], packed["n_act"],
                    packed["l_pad"], packed["h_pad"], int(b_tile))


# --------------------------------------------------------------------------
# Params / reference
# --------------------------------------------------------------------------

def init_params(key, l_obs, n_act, hidden_size=32):
    """Deterministic init mimicking nn.Linear default (uniform +-1/sqrt(fan_in)).

    Weights stored already transposed to (in, out); biases as (1, out) rows.
    """
    def linear(key, fan_in, fan_out):
        kw, kb = jax.random.split(key)
        bound = 1.0 / jnp.sqrt(fan_in)
        w = jax.random.uniform(kw, (fan_in, fan_out), jnp.float32, -bound, bound)
        b = jax.random.uniform(kb, (1, fan_out), jnp.float32, -bound, bound)
        return w, b

    keys = jax.random.split(key, 6)
    aw1, ab1 = linear(keys[0], l_obs, hidden_size)
    aw2, ab2 = linear(keys[1], hidden_size, hidden_size)
    aw3, ab3 = linear(keys[2], hidden_size, n_act)
    cw1, cb1 = linear(keys[3], l_obs, hidden_size)
    cw2, cb2 = linear(keys[4], hidden_size, hidden_size)
    cw3, cb3 = linear(keys[5], hidden_size, 1)
    return dict(
        aw1=aw1, ab1=ab1, aw2=aw2, ab2=ab2, aw3=aw3, ab3=ab3,
        cw1=cw1, cb1=cb1, cw2=cw2, cb2=cb2, cw3=cw3, cb3=cb3,
    )


def _reference_forward(x, p):
    """Pure-JAX f32 reference replicating the PyTorch forward semantics."""
    h = jnp.maximum(x @ p["aw1"] + p["ab1"], 0.0)
    h = jnp.maximum(h @ p["aw2"] + p["ab2"], 0.0)
    pi = h @ p["aw3"] + p["ab3"]
    g = jnp.maximum(x @ p["cw1"] + p["cb1"], 0.0)
    g = jnp.maximum(g @ p["cw2"] + p["cb2"], 0.0)
    vi = g @ p["cw3"] + p["cb3"]
    return pi, vi


# TODO(synk): MetaModule/MetaLinear meta-update machinery (update_params, copy,
# set_param) is host-side parameter bookkeeping, not part of the forward pass.

if __name__ == "__main__":
    l_obs, n_act, hidden = 16, 6, 32
    key = jax.random.PRNGKey(0)
    k_x, k_p, k_x2 = jax.random.split(key, 3)

    params = init_params(k_p, l_obs, n_act, hidden)
    packed = pack_params(params, l_obs, n_act, hidden)

    # bf16 MXU operands + bf16 output store => relaxed tolerance vs f32 reference.
    ATOL, RTOL = 5e-2, 5e-2

    # Case 1: small batch (single grid step).
    batch = 8
    x = jax.random.normal(k_x, (batch, l_obs), jnp.float32)
    pi, vi = actor_critic_forward(x, packed)
    jax.block_until_ready((pi, vi))
    pi_ref, vi_ref = _reference_forward(x, params)
    assert pi.shape == (batch, n_act) and vi.shape == (batch, 1)
    assert jnp.allclose(pi, pi_ref, atol=ATOL, rtol=RTOL), float(jnp.max(jnp.abs(pi - pi_ref)))
    assert jnp.allclose(vi, vi_ref, atol=ATOL, rtol=RTOL), float(jnp.max(jnp.abs(vi - vi_ref)))

    # Case 2: batch that exercises >=2 grid steps and ragged-tail padding.
    batch2 = 40
    x2 = jax.random.normal(k_x2, (batch2, l_obs), jnp.float32)
    pi2, vi2 = actor_critic_forward(x2, packed)
    jax.block_until_ready((pi2, vi2))
    pi2_ref, vi2_ref = _reference_forward(x2, params)
    assert pi2.shape == (batch2, n_act) and vi2.shape == (batch2, 1)
    assert jnp.allclose(pi2, pi2_ref, atol=ATOL, rtol=RTOL), float(jnp.max(jnp.abs(pi2 - pi2_ref)))
    assert jnp.allclose(vi2, vi2_ref, atol=ATOL, rtol=RTOL), float(jnp.max(jnp.abs(vi2 - vi2_ref)))

    print("KERNEL_OK")
</pallas_src>

<mosaic_0001>
module attributes {stable_mosaic.version = 11 : i64} {
  func.func @kernel(%arg0: i32, %arg1: memref<8x16xf32, #tpu.memory_space<vmem>>, %arg2: memref<272x128xbf16, #tpu.memory_space<vmem>>, %arg3: memref<8x128xf32, #tpu.memory_space<vmem>>, %arg4: memref<8x128xbf16, #tpu.memory_space<vmem>>) attributes {dimension_semantics = [#tpu.dimension_semantics<parallel>], iteration_bounds = array<i64: 1>, scalar_prefetch = 0 : i64, scratch_operands = 0 : i64, tpu.core_type = #tpu.core_type<tc>, window_params = [{transform_indices = @transform_0, window_bounds = array<i64: 8, 16>}, {pipeline_mode = #tpu.pipeline_mode<synchronous>, transform_indices = @transform_1, window_bounds = array<i64: 272, 128>}, {pipeline_mode = #tpu.pipeline_mode<synchronous>, transform_indices = @transform_2, window_bounds = array<i64: 8, 128>}, {transform_indices = @transform_3, window_bounds = array<i64: 8, 128>}]} {
    %c0 = arith.constant 0 : index
    %c0_0 = arith.constant 0 : index
    %0 = vector.load %arg1[%c0, %c0_0] : memref<8x16xf32, #tpu.memory_space<vmem>>, vector<8x16xf32>
    %1 = arith.truncf %0 : vector<8x16xf32> to vector<8x16xbf16>
    %c0_1 = arith.constant 0 : index
    %c0_2 = arith.constant 0 : index
    %2 = vector.load %arg2[%c0_1, %c0_2] : memref<272x128xbf16, #tpu.memory_space<vmem>>, vector<16x128xbf16>
    %c16 = arith.constant 16 : index
    %c0_3 = arith.constant 0 : index
    %3 = vector.load %arg2[%c16, %c0_3] : memref<272x128xbf16, #tpu.memory_space<vmem>>, vector<128x128xbf16>
    %c144 = arith.constant 144 : index
    %c0_4 = arith.constant 0 : index
    %4 = vector.load %arg2[%c144, %c0_4] : memref<272x128xbf16, #tpu.memory_space<vmem>>, vector<128x128xbf16>
    %c0_5 = arith.constant 0 : index
    %c0_6 = arith.constant 0 : index
    %5 = vector.load %arg3[%c0_5, %c0_6] : memref<8x128xf32, #tpu.memory_space<vmem>>, vector<1x128xf32>
    %c1 = arith.constant 1 : index
    %c0_7 = arith.constant 0 : index
    %6 = vector.load %arg3[%c1, %c0_7] : memref<8x128xf32, #tpu.memory_space<vmem>>, vector<1x128xf32>
    %c2 = arith.constant 2 : index
    %c0_8 = arith.constant 0 : index
    %7 = vector.load %arg3[%c2, %c0_8] : memref<8x128xf32, #tpu.memory_space<vmem>>, vector<1x128xf32>
    %cst = arith.constant dense<0.000000e+00> : vector<8x128xf32>
    %8 = tpu.matmul %1, %2, %cst {dimension_numbers = #tpu.dot_dimension_numbers<[1], [0], [0], [1], [0, 0, 1, 1], [], []>} : vector<8x16xbf16>, vector<16x128xbf16>, vector<8x128xf32> -> vector<8x128xf32>
    %9 = vector.broadcast %5 : vector<1x128xf32> to vector<8x128xf32>
    %10 = arith.addf %8, %9 : vector<8x128xf32>
    %cst_9 = arith.constant 0.000000e+00 : f32
    %11 = vector.broadcast %cst_9 : f32 to vector<8x128xf32>
    %12 = arith.maximumf %10, %11 : vector<8x128xf32>
    %13 = arith.truncf %12 : vector<8x128xf32> to vector<8x128xbf16>
    %cst_10 = arith.constant dense<0.000000e+00> : vector<8x128xf32>
    %14 = tpu.matmul %13, %3, %cst_10 {dimension_numbers = #tpu.dot_dimension_numbers<[1], [0], [0], [1], [0, 0, 1, 1], [], []>} : vector<8x128xbf16>, vector<128x128xbf16>, vector<8x128xf32> -> vector<8x128xf32>
    %15 = vector.broadcast %6 : vector<1x128xf32> to vector<8x128xf32>
    %16 = arith.addf %14, %15 : vector<8x128xf32>
    %cst_11 = arith.constant 0.000000e+00 : f32
    %17 = vector.broadcast %cst_11 : f32 to vector<8x128xf32>
    %18 = arith.maximumf %16, %17 : vector<8x128xf32>
    %19 = arith.truncf %18 : vector<8x128xf32> to vector<8x128xbf16>
    %cst_12 = arith.constant dense<0.000000e+00> : vector<8x128xf32>
    %20 = tpu.matmul %19, %4, %cst_12 {dimension_numbers = #tpu.dot_dimension_numbers<[1], [0], [0], [1], [0, 0, 1, 1], [], []>} : vector<8x128xbf16>, vector<128x128xbf16>, vector<8x128xf32> -> vector<8x128xf32>
    %21 = vector.broadcast %7 : vector<1x128xf32> to vector<8x128xf32>
    %22 = arith.addf %20, %21 : vector<8x128xf32>
    %23 = arith.truncf %22 : vector<8x128xf32> to vector<8x128xbf16>
    %c0_13 = arith.constant 0 : index
    %c0_14 = arith.constant 0 : index
    %24 = vector.load %arg4[%c0_13, %c0_14] : memref<8x128xbf16, #tpu.memory_space<vmem>>, vector<8x128xbf16>
    tpu.vector_store %arg4[%c0_13, %c0_14], %23 {strides = array<i32>} : memref<8x128xbf16, #tpu.memory_space<vmem>>, vector<8x128xbf16>,
    return
  }
  func.func @transform_0(%arg0: i32) -> (i32, i32) {
    %c0_i32 = arith.constant 0 : i32
    %c0_i32_0 = arith.constant 0 : i32
    return %arg0, %c0_i32 : i32, i32
  }
  func.func @transform_1(%arg0: i32) -> (i32, i32) {
    %c0_i32 = arith.constant 0 : i32
    %c0_i32_0 = arith.constant 0 : i32
    %c0_i32_1 = arith.constant 0 : i32
    return %c0_i32, %c0_i32_0 : i32, i32
  }
  func.func @transform_2(%arg0: i32) -> (i32, i32) {
    %c0_i32 = arith.constant 0 : i32
    %c0_i32_0 = arith.constant 0 : i32
    %c0_i32_1 = arith.constant 0 : i32
    return %c0_i32, %c0_i32_0 : i32, i32
  }
  func.func @transform_3(%arg0: i32) -> (i32, i32) {
    %c0_i32 = arith.constant 0 : i32
    %c0_i32_0 = arith.constant 0 : i32
    return %arg0, %c0_i32 : i32, i32
  }
}

</mosaic_0001>

<llo_original>
// kernel: _forward.1
$region0: #{_forward.1}
  #allocation0 [shape = 'u32[]', space=smem, size = 0x4, offset = 0x4, fixed_abs, tag = 'smem constant byte address 0x4 - core index']
  #allocation1 [shape = 'u32[144,128]{1,0:T(1,128)}', space=vmem, size = 0x12000, scoped, tag = 'internal scratch']
  %s0 = inlined_call_operand.hbm [shape: f32[8,16], index: 0, kind: input, shape index: {}]
  %s1 = inlined_call_operand.hbm [shape: bf16[272,128], index: 1, kind: input, shape index: {}]
  %s2 = inlined_call_operand.hbm [shape: f32[8,128], index: 2, kind: input, shape index: {}]
  %s3 = inlined_call_operand.vmem [shape: bf16[8,128], index: 3, kind: output, shape index: {}]
  %s4 = sld [smem:[#allocation0]]
  $region34: #{_forward.1} parent=0
    _
  %s6 = ssub.s32 1, %s4
  %s7 = scalar_select 0, %s6, %s4
  $region1: #{_forward.1} parent=0
    #allocation2 [shape = 'u8[4096]{0}', space=vmem, size = 0x1000, scoped, tag = 'input window, operand 0, single buffered']
    #allocation3 [shape = 's32[1]{0}', space=sflag, size = 0x4, scoped, tag = 'scoped memory for _forward.1']
    #allocation4 [shape = 'u8[69632]{0}', space=vmem, size = 0x11000, scoped, tag = 'input window, operand 1, single buffered']
    #allocation5 [shape = 's32[1]{0}', space=sflag, size = 0x4, scoped, tag = 'scoped memory for _forward.1']
    #allocation6 [shape = 'u8[4096]{0}', space=vmem, size = 0x1000, scoped, tag = 'input window, operand 2, single buffered']
    %8 = vsyncpa [#allocation3], 0
    %9 = vsyncpa [#allocation5], 0
    // Predicated region
    $region2: #{_forward.1} parent=1 // pred_check
      _
    $region3: #{_forward.1} parent=1 // pred_check_branch
      %11 = sbr.rel (0) target = $region5
    $region4: #{_forward.1} parent=1 // pred_region
      %s13 = ssub.s32 128, 128
      %14 = vsyncadd [#allocation3], %s13
      %s16 = sshll.u32 [#allocation2], 4
      %s17 = int_to_ptr.vmem [resolvable:$true] %s16
      %19 = dma.hbm_to_vmem [thread:$0]  %s0, 128, %s17, [#allocation3]
    $region5: #{_forward.1} parent=1 // pred_fallthru
      _
    // Predicated region
    $region6: #{_forward.1} parent=1 // pred_check
      _
    $region7: #{_forward.1} parent=1 // pred_check_branch
      %21 = sbr.rel (0) target = $region9
    $region8: #{_forward.1} parent=1 // pred_region
      %s23 = ssub.s32 2176, 2176
      %24 = vsyncadd [#allocation5], %s23
      %s25 = sshll.u32 [#allocation4], 4
      %s26 = int_to_ptr.vmem [resolvable:$true] %s25
      %31 = dma.hbm_to_vmem [thread:$0]  %s1, 2176, %s26, [#allocation5], 64, 64, 4
    $region9: #{_forward.1} parent=1 // pred_fallthru
      _
    // Predicated region
    $region10: #{_forward.1} parent=1 // pred_check
      _
    $region11: #{_forward.1} parent=1 // pred_check_branch
      %33 = sbr.rel (0) target = $region13
    $region12: #{_forward.1} parent=1 // pred_region
      %s35 = ssub.s32 128, 128
      %36 = vsyncadd [#allocation5], %s35
      %s38 = sshll.u32 [#allocation6], 4
      %s39 = int_to_ptr.vmem [resolvable:$true] %s38
      %41 = dma.hbm_to_vmem [thread:$0]  %s2, 128, %s39, [#allocation5]
    $region13: #{_forward.1} parent=1 // pred_fallthru
      _
    // Predicated region
    $region14: #{_forward.1} parent=1 // pred_check
      _
    $region15: #{_forward.1} parent=1 // pred_check_branch
      %43 = sbr.rel (0) target = $region17
    $region16: #{_forward.1} parent=1 // pred_region
      %44 = dma.done [#allocation3], 128
    $region17: #{_forward.1} parent=1 // pred_fallthru
      _
    // Predicated region
    $region18: #{_forward.1} parent=1 // pred_check
      _
    $region19: #{_forward.1} parent=1 // pred_check_branch
      %46 = sbr.rel (0) target = $region21
    $region20: #{_forward.1} parent=1 // pred_region
      %47 = dma.done [#allocation5], 2176
    $region21: #{_forward.1} parent=1 // pred_fallthru
      _
    // Predicated region
    $region22: #{_forward.1} parent=1 // pred_check
      _
    $region23: #{_forward.1} parent=1 // pred_check_branch
      %49 = sbr.rel (0) target = $region25
    $region24: #{_forward.1} parent=1 // pred_region
      %50 = dma.done [#allocation5], 128
    $region25: #{_forward.1} parent=1 // pred_fallthru
      _
    %v52 = vld [vmem:[#allocation2] sm:$0xff]
    %v53 = vpack.c.bf16 %v52, %v52
    %v54 = vld [vmem:[#allocation4] sm:$0xf]
    %v55 = vld [vmem:[#allocation4 + $0x4] sm:$0xf]
    %v56 = vld [vmem:[#allocation4 + $0x8] sm:$0xf]
    %v57 = vld [vmem:[#allocation4 + $0xc] sm:$0xf]
    %v58 = vld [vmem:[#allocation4 + $0x10] sm:$0xf]
    %v59 = vld [vmem:[#allocation4 + $0x14] sm:$0xf]
    %v60 = vld [vmem:[#allocation4 + $0x18] sm:$0xf]
    %v61 = vld [vmem:[#allocation4 + $0x1c] sm:$0xf]
    %v62 = vld [vmem:[#allocation4 + $0x20] sm:$0xf]
    %v63 = vld [vmem:[#allocation4 + $0x24] sm:$0xf]
    %v64 = vld [vmem:[#allocation4 + $0x28] sm:$0xf]
    %v65 = vld [vmem:[#allocation4 + $0x2c] sm:$0xf]
    %v66 = vld [vmem:[#allocation4 + $0x30] sm:$0xf]
    %v67 = vld [vmem:[#allocation4 + $0x34] sm:$0xf]
    %v68 = vld [vmem:[#allocation4 + $0x38] sm:$0xf]
    %v69 = vld [vmem:[#allocation4 + $0x3c] sm:$0xf]
    %v70 = vld [vmem:[#allocation4 + $0x40] sm:$0xf]
    %v71 = vld [vmem:[#allocation4 + $0x44] sm:$0xf]
    %v72 = vld [vmem:[#allocation4 + $0x48] sm:$0xf]
    %v73 = vld [vmem:[#allocation4 + $0x4c] sm:$0xf]
    %v74 = vld [vmem:[#allocation4 + $0x50] sm:$0xf]
    %v75 = vld [vmem:[#allocation4 + $0x54] sm:$0xf]
    %v76 = vld [vmem:[#allocation4 + $0x58] sm:$0xf]
    %v77 = vld [vmem:[#allocation4 + $0x5c] sm:$0xf]
    %v78 = vld [vmem:[#allocation4 + $0x60] sm:$0xf]
    %v79 = vld [vmem:[#allocation4 + $0x64] sm:$0xf]
    %v80 = vld [vmem:[#allocation4 + $0x68] sm:$0xf]
    %v81 = vld [vmem:[#allocation4 + $0x6c] sm:$0xf]
    %v82 = vld [vmem:[#allocation4 + $0x70] sm:$0xf]
    %v83 = vld [vmem:[#allocation4 + $0x74] sm:$0xf]
    %v84 = vld [vmem:[#allocation4 + $0x78] sm:$0xf]
    %v85 = vld [vmem:[#allocation4 + $0x7c] sm:$0xf]
    %v86 = vld [vmem:[#allocation4 + $0x80] sm:$0xf]
    %v87 = vld [vmem:[#allocation4 + $0x84] sm:$0xf]
    %v88 = vld [vmem:[#allocation6] sm:$0x1]
    %v89 = vld [vmem:[#allocation6 + $0x1] sm:$0x1]
    %v90 = vld [vmem:[#allocation6 + $0x2] sm:$0x1]
    %v91 = vlaneseq
    %v92 = vshrl.u32 %v91, 7
    %v93 = vsub.s32 0, %v92
    %v94 = vrot.slane %v88, %v93
    %v97 = vunpack.c.l.b16 %v54
    %v98 = vunpack.c.l.b16 %v55
    %v99 = vpack.c.b16 %v98, %v97
    %vm101 = vcmask 130048
    %v103 = vsel %vm101, %v53, 0
    %105 = vmatprep.subr.bf16.mxu0 0
    %106 = vmatpush1.bf16.msra.mxu0 %v99
    %107 = vmatprep.subr.bf16.mxu0 0
    %108 = vmatpush1.bf16.msra.mxu0 0
    %109 = vmatprep.subr.bf16.mxu0 0
    %110 = vmatpush1.bf16.msra.mxu0 0
    %111 = vmatprep.subr.bf16.mxu0 0
    %112 = vmatpush1.bf16.msra.mxu0 0
    %113 = vmatprep.subr.bf16.mxu0 0
    %114 = vmatpush1.bf16.msra.mxu0 0
    %115 = vmatprep.subr.bf16.mxu0 0
    %116 = vmatpush1.bf16.msra.mxu0 0
    %117 = vmatprep.subr.bf16.mxu0 0
    %118 = vmatpush1.bf16.msra.mxu0 0
    %119 = vmatprep.subr.bf16.mxu0 0
    %120 = vmatpush1.bf16.msra.mxu0 0
    %121 = vmatprep.subr.bf16.mxu0 0
    %122 = vmatpush1.bf16.msra.mxu0 0
    %123 = vmatprep.subr.bf16.mxu0 0
    %124 = vmatpush1.bf16.msra.mxu0 0
    %125 = vmatprep.subr.bf16.mxu0 0
    %126 = vmatpush1.bf16.msra.mxu0 0
    %127 = vmatprep.subr.bf16.mxu0 0
    %128 = vmatpush1.bf16.msra.mxu0 0
    %129 = vmatprep.subr.bf16.mxu0 0
    %130 = vmatpush1.bf16.msra.mxu0 0
    %131 = vmatprep.subr.bf16.mxu0 0
    %132 = vmatpush1.bf16.msra.mxu0 0
    %133 = vmatprep.subr.bf16.mxu0 0
    %134 = vmatpush1.bf16.msra.mxu0 0
    %135 = vmatprep.subr.bf16.mxu0 0
    %136 = vmatpush1.bf16.msra.mxu0 0
    %137 = vmatprep.mubr.bf16.mxu0 0
    %138 = vmatmul.mubr.bf16.gmra.mrb[0].mxu0 %v103
    %v139 = vpop.f32.mrb[0].mxu0
    %v140 = vadd.f32 %v94, %v139
    %v141 = vpop.f32.mrb[0].mxu0
    %v142 = vpop.f32.mrb[0].mxu0
    %v143 = vpop.f32.mrb[0].mxu0
    %144 = vdwg.mxu0
    %v145 = vmax.f32 %v140, 0.0
    %v146 = vpack.c.bf16 %v145, %v145
    %v147 = vlaneseq
    %v148 = vshrl.u32 %v147, 7
    %v149 = vsub.s32 0, %v148
    %v150 = vrot.slane %v89, %v149
    %v167 = vunpack.c.l.b16 %v56
    %v168 = vunpack.c.l.b16 %v57
    %v169 = vunpack.c.l.b16 %v58
    %v170 = vunpack.c.l.b16 %v59
    %v171 = vunpack.c.l.b16 %v60
    %v172 = vunpack.c.l.b16 %v61
    %v173 = vunpack.c.l.b16 %v62
    %v174 = vunpack.c.l.b16 %v63
    %v175 = vunpack.c.l.b16 %v64
    %v176 = vunpack.c.l.b16 %v65
    %v177 = vunpack.c.l.b16 %v66
    %v178 = vunpack.c.l.b16 %v67
    %v179 = vunpack.c.l.b16 %v68
    %v180 = vunpack.c.l.b16 %v69
    %v181 = vunpack.c.l.b16 %v70
    %v182 = vunpack.c.l.b16 %v71
    %v183 = vpack.c.b16 %v168, %v167
    %v184 = vpack.c.b16 %v170, %v169
    %v185 = vpack.c.b16 %v172, %v171
    %v186 = vpack.c.b16 %v174, %v173
    %v187 = vpack.c.b16 %v176, %v175
    %v188 = vpack.c.b16 %v178, %v177
    %v189 = vpack.c.b16 %v180, %v179
    %v190 = vpack.c.b16 %v182, %v181
    %199 = vmatprep.subr.bf16.mxu0 0
    %200 = vmatpush1.bf16.msra.mxu0 %v183
    %201 = vmatprep.subr.bf16.mxu0 0
    %202 = vmatpush1.bf16.msra.mxu0 %v184
    %203 = vmatprep.subr.bf16.mxu0 0
    %204 = vmatpush1.bf16.msra.mxu0 %v185
    %205 = vmatprep.subr.bf16.mxu0 0
    %206 = vmatpush1.bf16.msra.mxu0 %v186
    %207 = vmatprep.subr.bf16.mxu0 0
    %208 = vmatpush1.bf16.msra.mxu0 %v187
    %209 = vmatprep.subr.bf16.mxu0 0
    %210 = vmatpush1.bf16.msra.mxu0 %v188
    %211 = vmatprep.subr.bf16.mxu0 0
    %212 = vmatpush1.bf16.msra.mxu0 %v189
    %213 = vmatprep.subr.bf16.mxu0 0
    %214 = vmatpush1.bf16.msra.mxu0 %v190
    %215 = vmatprep.subr.bf16.mxu0 0
    %216 = vmatpush1.bf16.msra.mxu0 0
    %217 = vmatprep.subr.bf16.mxu0 0
    %218 = vmatpush1.bf16.msra.mxu0 0
    %219 = vmatprep.subr.bf16.mxu0 0
    %220 = vmatpush1.bf16.msra.mxu0 0
    %221 = vmatprep.subr.bf16.mxu0 0
    %222 = vmatpush1.bf16.msra.mxu0 0
    %223 = vmatprep.subr.bf16.mxu0 0
    %224 = vmatpush1.bf16.msra.mxu0 0
    %225 = vmatprep.subr.bf16.mxu0 0
    %226 = vmatpush1.bf16.msra.mxu0 0
    %227 = vmatprep.subr.bf16.mxu0 0
    %228 = vmatpush1.bf16.msra.mxu0 0
    %229 = vmatprep.subr.bf16.mxu0 0
    %230 = vmatpush1.bf16.msra.mxu0 0
    %231 = vmatprep.mubr.bf16.mxu0 0
    %232 = vmatmul.mubr.bf16.gmra.mrb[0].mxu0 %v146
    %v233 = vpop.f32.mrb[0].mxu0
    %v234 = vadd.f32 %v150, %v233
    %v235 = vpop.f32.mrb[0].mxu0
    %v236 = vpop.f32.mrb[0].mxu0
    %v237 = vpop.f32.mrb[0].mxu0
    %238 = vdwg.mxu0
    %v239 = vmax.f32 %v234, 0.0
    %v240 = vpack.c.bf16 %v239, %v239
    %v241 = vlaneseq
    %v242 = vshrl.u32 %v241, 7
    %v243 = vsub.s32 0, %v242
    %v244 = vrot.slane %v90, %v243
    %v261 = vunpack.c.l.b16 %v72
    %v262 = vunpack.c.l.b16 %v73
    %v263 = vunpack.c.l.b16 %v74
    %v264 = vunpack.c.l.b16 %v75
    %v265 = vunpack.c.l.b16 %v76
    %v266 = vunpack.c.l.b16 %v77
    %v267 = vunpack.c.l.b16 %v78
    %v268 = vunpack.c.l.b16 %v79
    %v269 = vunpack.c.l.b16 %v80
    %v270 = vunpack.c.l.b16 %v81
    %v271 = vunpack.c.l.b16 %v82
    %v272 = vunpack.c.l.b16 %v83
    %v273 = vunpack.c.l.b16 %v84
    %v274 = vunpack.c.l.b16 %v85
    %v275 = vunpack.c.l.b16 %v86
    %v276 = vunpack.c.l.b16 %v87
    %v277 = vpack.c.b16 %v262, %v261
    %v278 = vpack.c.b16 %v264, %v263
    %v279 = vpack.c.b16 %v266, %v265
    %v280 = vpack.c.b16 %v268, %v267
    %v281 = vpack.c.b16 %v270, %v269
    %v282 = vpack.c.b16 %v272, %v271
    %v283 = vpack.c.b16 %v274, %v273
    %v284 = vpack.c.b16 %v276, %v275
    %293 = vmatprep.subr.bf16.mxu0 0
    %294 = vmatpush1.bf16.msra.mxu0 %v277
    %295 = vmatprep.subr.bf16.mxu0 0
    %296 = vmatpush1.bf16.msra.mxu0 %v278
    %297 = vmatprep.subr.bf16.mxu0 0
    %298 = vmatpush1.bf16.msra.mxu0 %v279
    %299 = vmatprep.subr.bf16.mxu0 0
    %300 = vmatpush1.bf16.msra.mxu0 %v280
    %301 = vmatprep.subr.bf16.mxu0 0
    %302 = vmatpush1.bf16.msra.mxu0 %v281
    %303 = vmatprep.subr.bf16.mxu0 0
    %304 = vmatpush1.bf16.msra.mxu0 %v282
    %305 = vmatprep.subr.bf16.mxu0 0
    %306 = vmatpush1.bf16.msra.mxu0 %v283
    %307 = vmatprep.subr.bf16.mxu0 0
    %308 = vmatpush1.bf16.msra.mxu0 %v284
    %309 = vmatprep.subr.bf16.mxu0 0
    %310 = vmatpush1.bf16.msra.mxu0 0
    %311 = vmatprep.subr.bf16.mxu0 0
    %312 = vmatpush1.bf16.msra.mxu0 0
    %313 = vmatprep.subr.bf16.mxu0 0
    %314 = vmatpush1.bf16.msra.mxu0 0
    %315 = vmatprep.subr.bf16.mxu0 0
    %316 = vmatpush1.bf16.msra.mxu0 0
    %317 = vmatprep.subr.bf16.mxu0 0
    %318 = vmatpush1.bf16.msra.mxu0 0
    %319 = vmatprep.subr.bf16.mxu0 0
    %320 = vmatpush1.bf16.msra.mxu0 0
    %321 = vmatprep.subr.bf16.mxu0 0
    %322 = vmatpush1.bf16.msra.mxu0 0
    %323 = vmatprep.subr.bf16.mxu0 0
    %324 = vmatpush1.bf16.msra.mxu0 0
    %325 = vmatprep.mubr.bf16.mxu0 0
    %326 = vmatmul.mubr.bf16.gmra.mrb[0].mxu0 %v240
    %v327 = vpop.f32.mrb[0].mxu0
    %v328 = vadd.f32 %v244, %v327
    %v329 = vpop.f32.mrb[0].mxu0
    %v330 = vpop.f32.mrb[0].mxu0
    %v331 = vpop.f32.mrb[0].mxu0
    %332 = vdwg.mxu0
    %v333 = vpack.c.bf16 %v328, %v328
    %334 = vst [vmem:[%s3] sm:$0xf] %v333
    // Predicated region
    $region26: #{_forward.1} parent=1 // pred_check
      _
    $region27: #{_forward.1} parent=1 // pred_check_branch
      %336 = sbr.rel (0) target = $region29
    $region28: #{_forward.1} parent=1 // pred_region
      _
    $region29: #{_forward.1} parent=1 // pred_fallthru
      _
    // Predicated region
    $region30: #{_forward.1} parent=1 // pred_check
      _
    $region31: #{_forward.1} parent=1 // pred_check_branch
      %338 = sbr.rel (0) target = $region33
    $region32: #{_forward.1} parent=1 // pred_region
      _
    $region33: #{_forward.1} parent=1 // pred_fallthru
      _
    %339 = vsyncpa [#allocation3], 1
    %340 = vsyncpa [#allocation5], 1

</llo_original>
